<compile_context>
chip_gen: v7x
topology: tpu7x:2x2x1
jax: 0.10.0
libtpu: 0.0.40
codegen_flags: <defaults>
</compile_context>

<pallas_src>
import math

import jax
import jax.numpy as jnp
from jax.experimental import pallas as pl
from jax.experimental.pallas import tpu as pltpu

_MIB = 1024 * 1024
_DEFAULT_SMALL_BYTES = 1 * _MIB  # below this, pallas_call overhead dominates


def _sublane_multiple(dtype) -> int:
    """Packed sublane tile: 8 for 4-byte, 16 for 2-byte, 32 for 1-byte dtypes."""
    itemsize = jnp.dtype(dtype).itemsize
    return max(8, 32 // max(1, itemsize))


def _device_limits():
    """(max_block_bytes, vmem_limit_bytes, num_tensorcores) for this chip gen."""
    kind = ""
    try:
        kind = jax.devices()[0].device_kind.lower()
    except Exception:  # pragma: no cover - be conservative if query fails
        pass
    if "v7" in kind or "7x" in kind:
        # 64 MiB physical VMEM/TC, 3.2 TB/s HBM: 8 MiB blocks (4x = 32 MiB
        # double-buffered) amortize step overhead to ~6-7% with headroom.
        return 8 * _MIB, 48 * _MIB, 2
    if "v6" in kind:
        # 128 MiB VMEM, 1.4 TB/s HBM: big blocks are free.
        return 16 * _MIB, 64 * _MIB, 1
    if "v5" in kind:
        # 0.82 TB/s HBM: 4 MiB already makes step overhead <4%; don't chase more.
        return 4 * _MIB, 32 * _MIB, 1
    # Unknown / CPU-interpret fallback: conservative values valid everywhere.
    return 4 * _MIB, 32 * _MIB, 1


def _copy_kernel(x_ref, o_ref):
    # Identity data pass — the only "compute" a reshape/view could imply.
    o_ref[...] = x_ref[...]


def _identity_copy_2d(x2d):
    """Tiled identity pass over a (R, C) array with C a multiple of 128."""
    r, c = x2d.shape
    itemsize = x2d.dtype.itemsize
    sub = _sublane_multiple(x2d.dtype)
    max_block_bytes, vmem_limit_bytes, num_tc = _device_limits()

    # Largest sublane-aligned row block within the per-block VMEM budget.
    max_rows = max(sub, (max_block_bytes // (c * itemsize)) // sub * sub)
    if r <= max_rows:
        block_rows = r          # full extent: no divisibility requirement
    else:
        block_rows = max_rows   # sublane multiple; ragged tail handled by Pallas

    # On 2-TC chips (v7x) make sure there are >=2 grid steps so both
    # TensorCores get work, provided the array is splittable on sublane tiles.
    if num_tc > 1 and block_rows == r and r >= 2 * sub:
        half = (((r + 1) // 2) + sub - 1) // sub * sub
        if 0 < half < r:
            block_rows = half

    grid = (pl.cdiv(r, block_rows),)
    spec = pl.BlockSpec((block_rows, c), lambda i: (i, 0))

    return pl.pallas_call(
        _copy_kernel,
        out_shape=jax.ShapeDtypeStruct((r, c), x2d.dtype),
        grid_spec=pltpu.PrefetchScalarGridSpec(
            num_scalar_prefetch=0,
            grid=grid,
            in_specs=[spec],
            out_specs=spec,
        ),
        compiler_params=pltpu.CompilerParams(
            # "parallel" lets the copy shard across both TensorCores on v7x;
            # measured no-op on single-TC v5e/v6e.
            dimension_semantics=("parallel",),
            vmem_limit_bytes=vmem_limit_bytes,
        ),
        cost_estimate=pl.CostEstimate(
            flops=0,
            transcendentals=0,
            bytes_accessed=2 * r * c * itemsize,  # read + write
        ),
    )(x2d)


def reshape_pallas(x, *shape, use_pallas_copy=False, min_bytes=_DEFAULT_SMALL_BYTES):
    """Equivalent of Reshape(*shape).forward(x) == x.view(x.shape[0], *shape).

    Hot path (default): metadata-only jnp.reshape — exactly what torch .view
    does on a contiguous tensor, zero HBM traffic.

    use_pallas_copy=True: benchmark/verification mode that routes the data
    through a tiled Pallas identity-copy kernel (2x tensor size of HBM traffic).
    """
    b = x.shape[0]
    f = math.prod(x.shape[1:])
    if f != math.prod(shape):
        raise ValueError(f"cannot view {x.shape} as ({b}, {shape})")
    out_shape = (b, *shape)

    if not use_pallas_copy:
        return jnp.reshape(x, out_shape)           # metadata only

    total = b * f
    itemsize = jnp.dtype(x.dtype).itemsize

    # Small-input bailout: fixed pallas_call/grid/DMA cost dominates.
    if total * itemsize < min_bytes:
        return jnp.reshape(x, out_shape)

    # Pick a lane-dense minor dim (any multiple of 128 gives unmasked vst).
    lanes = 0
    for cand in (1024, 512, 256, 128):
        if total % cand == 0:
            lanes = cand
            break
    if not lanes:
        # Ragged total: a contiguous view needs no data movement anyway.
        return jnp.reshape(x, out_shape)

    x2d = jnp.reshape(x, (total // lanes, lanes))   # metadata only
    y2d = _identity_copy_2d(x2d)                    # Pallas tiled copy
    return jnp.reshape(y2d, out_shape)              # metadata only


if __name__ == "__main__":
    key = jax.random.PRNGKey(0)
    # Encoder-style feature map: (batch=2, C=4, H=16, W=16)
    x = jax.random.normal(key, (2, 4, 16, 16), dtype=jnp.float32)

    # Reshape module configured as Reshape(4, 256): x.view(B, 4, 256)
    target_shape = (4, 256)

    # Hot path: metadata-only view (default, matches torch .view semantics).
    y = reshape_pallas(x, *target_shape)
    y = jax.block_until_ready(y)

    # Opt-in Pallas path: exercise the identity-copy kernel once on TPU
    # (min_bytes=0 bypasses the small-input bailout for this tiny demo).
    y_copy = reshape_pallas(x, *target_shape, use_pallas_copy=True, min_bytes=0)
    y_copy = jax.block_until_ready(y_copy)

    # Reference: row-major reshape (exact torch .view semantics on contiguous input).
    y_ref = jnp.reshape(x, (x.shape[0], *target_shape))

    assert y.shape == (2, 4, 256), y.shape
    assert y.dtype == x.dtype
    assert bool(jnp.all(y == y_ref))

    assert y_copy.shape == (2, 4, 256), y_copy.shape
    assert y_copy.dtype == x.dtype
    assert bool(jnp.all(y_copy == y_ref))

    print("KERNEL_OK")
</pallas_src>

<mosaic_0001>
module attributes {stable_mosaic.version = 11 : i64} {
  func.func @_copy_kernel(%arg0: i32, %arg1: memref<2x1024xf32, #tpu.memory_space<vmem>>, %arg2: memref<2x1024xf32, #tpu.memory_space<vmem>>) attributes {dimension_semantics = [#tpu.dimension_semantics<parallel>], iteration_bounds = array<i64: 1>, scalar_prefetch = 0 : i64, scratch_operands = 0 : i64, tpu.core_type = #tpu.core_type<tc>, window_params = [{transform_indices = @transform_0, window_bounds = array<i64: 2, 1024>}, {transform_indices = @transform_1, window_bounds = array<i64: 2, 1024>}]} {
    %c0 = arith.constant 0 : index
    %c0_0 = arith.constant 0 : index
    %0 = vector.load %arg1[%c0, %c0_0] : memref<2x1024xf32, #tpu.memory_space<vmem>>, vector<2x1024xf32>
    %c0_1 = arith.constant 0 : index
    %c0_2 = arith.constant 0 : index
    %1 = vector.load %arg2[%c0_1, %c0_2] : memref<2x1024xf32, #tpu.memory_space<vmem>>, vector<2x1024xf32>
    tpu.vector_store %arg2[%c0_1, %c0_2], %0 {strides = array<i32>} : memref<2x1024xf32, #tpu.memory_space<vmem>>, vector<2x1024xf32>,
    return
  }
  func.func @transform_0(%arg0: i32) -> (i32, i32) {
    %c0_i32 = arith.constant 0 : i32
    %c0_i32_0 = arith.constant 0 : i32
    return %arg0, %c0_i32 : i32, i32
  }
  func.func @transform_1(%arg0: i32) -> (i32, i32) {
    %c0_i32 = arith.constant 0 : i32
    %c0_i32_0 = arith.constant 0 : i32
    return %arg0, %c0_i32 : i32, i32
  }
}

</mosaic_0001>

<llo_original>
// kernel: tpu_custom_call.1
$region0: #{tpu_custom_call.1}
  #allocation0 [shape = 'u32[]', space=smem, size = 0x4, offset = 0x4, fixed_abs, tag = 'smem constant byte address 0x4 - core index']
  #allocation1 [shape = 'u32[144,128]{1,0:T(1,128)}', space=vmem, size = 0x12000, scoped, tag = 'internal scratch']
  %s0 = inlined_call_operand.hbm [shape: f32[2,1024], index: 0, kind: input, shape index: {}]
  %s1 = inlined_call_operand.hbm [shape: f32[2,1024], index: 1, kind: output, shape index: {}]
  %s2 = sld [smem:[#allocation0]]
  $region18: #{tpu_custom_call.1} parent=0
    _
  %s4 = ssub.s32 1, %s2
  %s5 = scalar_select 0, %s4, %s2
  $region1: #{tpu_custom_call.1} parent=0
    #allocation2 [shape = 'u8[8192]{0}', space=vmem, size = 0x2000, scoped, tag = 'input window, operand 0, single buffered']
    #allocation3 [shape = 's32[1]{0}', space=sflag, size = 0x4, scoped, tag = 'scoped memory for tpu_custom_call.1']
    #allocation4 [shape = 's32[1]{0}', space=sflag, size = 0x4, scoped, tag = 'scoped memory for tpu_custom_call.1']
    #allocation5 [shape = 'u8[8192]{0}', space=vmem, size = 0x2000, scoped, tag = 'output window, operand 0, single buffered']
    %6 = vsyncpa [#allocation3], 0
    %7 = vsyncpa [#allocation4], 0
    // Predicated region
    $region2: #{tpu_custom_call.1} parent=1 // pred_check
      _
    $region3: #{tpu_custom_call.1} parent=1 // pred_check_branch
      %9 = sbr.rel (0) target = $region5
    $region4: #{tpu_custom_call.1} parent=1 // pred_region
      %s11 = ssub.s32 256, 256
      %12 = vsyncadd [#allocation3], %s11
      %s14 = sshll.u32 [#allocation2], 4
      %s15 = int_to_ptr.vmem [resolvable:$true] %s14
      %17 = dma.hbm_to_vmem [thread:$0]  %s0, 256, %s15, [#allocation3]
    $region5: #{tpu_custom_call.1} parent=1 // pred_fallthru
      _
    // Predicated region
    $region6: #{tpu_custom_call.1} parent=1 // pred_check
      _
    $region7: #{tpu_custom_call.1} parent=1 // pred_check_branch
      %19 = sbr.rel (0) target = $region9
    $region8: #{tpu_custom_call.1} parent=1 // pred_region
      %20 = dma.done [#allocation3], 256
    $region9: #{tpu_custom_call.1} parent=1 // pred_fallthru
      _
    %v21 = vld [vmem:[#allocation2] sm:$0xff]
    %v22 = vld [vmem:[#allocation2 + $0x8] sm:$0xff]
    %23 = vst [vmem:[#allocation5] sm:$0xff] %v21
    %24 = vst [vmem:[#allocation5 + $0x8] sm:$0xff] %v22
    // Predicated region
    $region10: #{tpu_custom_call.1} parent=1 // pred_check
      _
    $region11: #{tpu_custom_call.1} parent=1 // pred_check_branch
      %26 = sbr.rel (0) target = $region13
    $region12: #{tpu_custom_call.1} parent=1 // pred_region
      %s28 = ssub.s32 256, 256
      %29 = vsyncadd [#allocation4], %s28
      %s31 = sshll.u32 [#allocation5], 4
      %s32 = int_to_ptr.vmem [resolvable:$true] %s31
      %34 = dma.vmem_to_hbm [thread:$0]  %s32, 256, %s1, [#allocation4]
    $region13: #{tpu_custom_call.1} parent=1 // pred_fallthru
      _
    // Predicated region
    $region14: #{tpu_custom_call.1} parent=1 // pred_check
      _
    $region15: #{tpu_custom_call.1} parent=1 // pred_check_branch
      %36 = sbr.rel (0) target = $region17
    $region16: #{tpu_custom_call.1} parent=1 // pred_region
      %37 = dma.done [#allocation4], 256
    $region17: #{tpu_custom_call.1} parent=1 // pred_fallthru
      _
    %38 = vsyncpa [#allocation3], 1
    %39 = vsyncpa [#allocation4], 1

</llo_original>
